<compile_context>
chip_gen: v5e
topology: v5e:2x2
jax: 0.10.0
libtpu: 0.0.40
codegen_flags: <defaults>
</compile_context>

<pallas_src>
import jax
import jax.numpy as jnp
from jax import lax
from jax.experimental import pallas as pl
from jax.experimental.pallas import tpu as pltpu


def _pair_indices(num_fields):
    rows, cols = [], []
    for i in range(num_fields - 1):
        for j in range(i + 1, num_fields):
            rows.append(i)
            cols.append(j)
    return rows, cols


def _make_opn_kernel(num_fields, kernel_type):
    rows, cols = _pair_indices(num_fields)
    num_ix = len(rows)

    def kernel_fn(x_ref, w_ref, o_ref):
        x = x_ref[...].astype(jnp.float32)              # (TB, F, E)
        w = w_ref[...].astype(jnp.float32)
        chunks = []
        if kernel_type == "mat":
            for k in range(num_ix):                     # static unroll
                xi = x[:, rows[k], :]                   # (TB, E)
                xj = x[:, cols[k], :]                   # (TB, E)
                wk = w[:, k, :]                         # (E_out, E_in)
                kp = lax.dot_general(                   # MXU: (TB, E_out)
                    xi, wk, (((1,), (1,)), ((), ())),
                    preferred_element_type=jnp.float32)
                chunks.append(jnp.sum(kp * xj, axis=-1, keepdims=True))
        else:
            # Pairs with row field i occupy a contiguous block of the pair
            # index, and their column fields are the contiguous slice i+1..F-1,
            # so each group is pure dense slicing (no gathers).
            off = 0
            for i in range(num_fields - 1):
                n_i = num_fields - 1 - i
                prod = x[:, i:i + 1, :] * x[:, i + 1:, :]      # (TB, n_i, E)
                if kernel_type == "vec":
                    wk = w[off:off + n_i, :][None, :, :]       # (1, n_i, E)
                    chunks.append(jnp.sum(prod * wk, axis=-1))  # (TB, n_i)
                else:                                          # "num"
                    wk = w[off:off + n_i, 0][None, :]          # (1, n_i)
                    chunks.append(jnp.sum(prod, axis=-1) * wk)  # (TB, n_i)
                off += n_i
        out = jnp.concatenate(chunks, axis=-1)          # (TB, num_ix)
        o_ref[...] = out.astype(o_ref.dtype)

    return kernel_fn


def _choose_block_b(batch, num_fields, embed_dim, num_ix, itemsize):
    # Conservative budget: double-buffered input + output blocks must fit the
    # smallest scoped-VMEM default (v5e: 16 MiB) and stay well under v7x's
    # 64 MiB physical VMEM.
    budget_bytes = 8 * 1024 * 1024
    bytes_per_row = 2 * (num_fields * embed_dim + num_ix) * max(int(itemsize), 4)
    tb = budget_bytes // max(bytes_per_row, 1)
    tb = max(8, min(tb, 1024))
    if tb >= batch:
        return batch
    return max(8, (tb // 8) * 8)


def outer_product_network(x, kernel, kernel_type="num", block_b=None):
    """x: (B, F, E); kernel: OPN weight for `kernel_type`; returns (B, F*(F-1)//2)."""
    if kernel_type not in ("mat", "vec", "num"):
        raise ValueError("unknown kernel type: " + kernel_type)
    B, F, E = x.shape
    num_ix = F * (F - 1) // 2

    if block_b is None:
        block_b = _choose_block_b(B, F, E, num_ix, jnp.dtype(x.dtype).itemsize)
    block_b = min(int(block_b), B)
    if block_b < B:
        block_b = max(8, (block_b // 8) * 8)

    grid = (pl.cdiv(B, block_b),)
    kernel_fn = _make_opn_kernel(F, kernel_type)
    w_ndim = kernel.ndim

    return pl.pallas_call(
        kernel_fn,
        out_shape=jax.ShapeDtypeStruct((B, num_ix), x.dtype),
        grid=grid,
        in_specs=[
            pl.BlockSpec((block_b, F, E), lambda i: (i, 0, 0)),
            pl.BlockSpec(kernel.shape, lambda i: (0,) * w_ndim),
        ],
        out_specs=pl.BlockSpec((block_b, num_ix), lambda i: (i, 0)),
        compiler_params=pltpu.CompilerParams(
            dimension_semantics=("parallel",)),
    )(x, kernel)


def outer_product_network_ref(x, kernel, kernel_type):
    """Pure-JAX reference mirroring the torch forward."""
    F = x.shape[1]
    rows, cols = _pair_indices(F)
    p = x[:, jnp.asarray(rows)]
    q = x[:, jnp.asarray(cols)]
    if kernel_type == "mat":
        kp = jnp.sum(p[:, None, :, :] * kernel[None, ...], axis=-1)  # (B, E, num_ix)
        kp = jnp.transpose(kp, (0, 2, 1))                            # (B, num_ix, E)
        return jnp.sum(kp * q, axis=-1)
    return jnp.sum(p * q * kernel[None, ...], axis=-1)


def _xavier_uniform(key, shape, dtype=jnp.float32):
    if len(shape) == 2:
        fan_in, fan_out = shape[1], shape[0]
    else:
        receptive = 1
        for s in shape[2:]:
            receptive *= s
        fan_in, fan_out = shape[1] * receptive, shape[0] * receptive
    a = (6.0 / (fan_in + fan_out)) ** 0.5
    return jax.random.uniform(key, shape, dtype, minval=-a, maxval=a)


if __name__ == "__main__":
    key = jax.random.PRNGKey(0)
    kx, kx2, kn, kv, km = jax.random.split(key, 5)

    B, F, E = 2, 4, 32
    num_ix = F * (F - 1) // 2
    x = jax.random.normal(kx, (B, F, E), dtype=jnp.float32)

    tests = [
        ("num", _xavier_uniform(kn, (num_ix, 1))),
        ("vec", _xavier_uniform(kv, (num_ix, E))),
        ("mat", _xavier_uniform(km, (E, num_ix, E))),
    ]
    for ktype, w in tests:
        out = jax.block_until_ready(
            outer_product_network(x, w, kernel_type=ktype))
        ref = outer_product_network_ref(x, w, ktype)
        assert out.shape == (B, num_ix), (ktype, out.shape)
        assert jnp.allclose(out, ref, atol=1e-5, rtol=1e-5), ktype

    # Exercise the batch-tiled, pipelined multi-block path for all types.
    B2 = 64
    x2 = jax.random.normal(kx2, (B2, F, E), dtype=jnp.float32)
    for ktype, w in tests:
        out2 = jax.block_until_ready(
            outer_product_network(x2, w, kernel_type=ktype, block_b=16))
        ref2 = outer_product_network_ref(x2, w, ktype)
        assert out2.shape == (B2, num_ix), (ktype, out2.shape)
        assert jnp.allclose(out2, ref2, atol=1e-5, rtol=1e-5), ktype

    print("KERNEL_OK")
</pallas_src>

<mosaic_0001>
module attributes {stable_mosaic.version = 11 : i64} {
  func.func @kernel_fn(%arg0: i32, %arg1: memref<2x4x32xf32, #tpu.memory_space<vmem>>, %arg2: memref<6x1xf32, #tpu.memory_space<vmem>>, %arg3: memref<2x6xf32, #tpu.memory_space<vmem>>) attributes {dimension_semantics = [#tpu.dimension_semantics<parallel>], iteration_bounds = array<i64: 1>, scalar_prefetch = 0 : i64, scratch_operands = 0 : i64, tpu.core_type = #tpu.core_type<tc>, window_params = [{transform_indices = @transform_0, window_bounds = array<i64: 2, 4, 32>}, {pipeline_mode = #tpu.pipeline_mode<synchronous>, transform_indices = @transform_1, window_bounds = array<i64: 6, 1>}, {transform_indices = @transform_2, window_bounds = array<i64: 2, 6>}]} {
    %c0 = arith.constant 0 : index
    %c0_0 = arith.constant 0 : index
    %c0_1 = arith.constant 0 : index
    %0 = vector.load %arg1[%c0, %c0_0, %c0_1] : memref<2x4x32xf32, #tpu.memory_space<vmem>>, vector<2x4x32xf32>
    %c0_2 = arith.constant 0 : index
    %c0_3 = arith.constant 0 : index
    %1 = vector.load %arg2[%c0_2, %c0_3] : memref<6x1xf32, #tpu.memory_space<vmem>>, vector<6x1xf32>
    %2 = vector.extract_strided_slice %0 {offsets = [0, 0, 0], sizes = [2, 1, 32], strides = [1, 1, 1]} : vector<2x4x32xf32> to vector<2x1x32xf32>
    %3 = vector.extract_strided_slice %0 {offsets = [0, 1, 0], sizes = [2, 3, 32], strides = [1, 1, 1]} : vector<2x4x32xf32> to vector<2x3x32xf32>
    %4 = vector.broadcast %2 : vector<2x1x32xf32> to vector<2x3x32xf32>
    %5 = arith.mulf %4, %3 : vector<2x3x32xf32>
    %6 = vector.extract_strided_slice %1 {offsets = [0, 0], sizes = [3, 1], strides = [1, 1]} : vector<6x1xf32> to vector<3x1xf32>
    %7 = vector.shape_cast %6 : vector<3x1xf32> to vector<3xf32>
    %8 = vector.shape_cast %7 : vector<3xf32> to vector<1x3xf32>
    %cst = arith.constant dense<0.000000e+00> : vector<2x3xf32>
    %9 = vector.multi_reduction <add>, %5, %cst [2] : vector<2x3x32xf32> to vector<2x3xf32>
    %10 = vector.broadcast %8 : vector<1x3xf32> to vector<2x3xf32>
    %11 = arith.mulf %9, %10 : vector<2x3xf32>
    %12 = vector.extract_strided_slice %0 {offsets = [0, 1, 0], sizes = [2, 1, 32], strides = [1, 1, 1]} : vector<2x4x32xf32> to vector<2x1x32xf32>
    %13 = vector.extract_strided_slice %0 {offsets = [0, 2, 0], sizes = [2, 2, 32], strides = [1, 1, 1]} : vector<2x4x32xf32> to vector<2x2x32xf32>
    %14 = vector.broadcast %12 : vector<2x1x32xf32> to vector<2x2x32xf32>
    %15 = arith.mulf %14, %13 : vector<2x2x32xf32>
    %16 = vector.extract_strided_slice %1 {offsets = [3, 0], sizes = [2, 1], strides = [1, 1]} : vector<6x1xf32> to vector<2x1xf32>
    %17 = vector.shape_cast %16 : vector<2x1xf32> to vector<2xf32>
    %18 = vector.shape_cast %17 : vector<2xf32> to vector<1x2xf32>
    %cst_4 = arith.constant dense<0.000000e+00> : vector<2x2xf32>
    %19 = vector.multi_reduction <add>, %15, %cst_4 [2] : vector<2x2x32xf32> to vector<2x2xf32>
    %20 = vector.broadcast %18 : vector<1x2xf32> to vector<2x2xf32>
    %21 = arith.mulf %19, %20 : vector<2x2xf32>
    %22 = vector.extract_strided_slice %0 {offsets = [0, 2, 0], sizes = [2, 1, 32], strides = [1, 1, 1]} : vector<2x4x32xf32> to vector<2x1x32xf32>
    %23 = vector.extract_strided_slice %0 {offsets = [0, 3, 0], sizes = [2, 1, 32], strides = [1, 1, 1]} : vector<2x4x32xf32> to vector<2x1x32xf32>
    %24 = arith.mulf %22, %23 : vector<2x1x32xf32>
    %25 = vector.extract_strided_slice %1 {offsets = [5, 0], sizes = [1, 1], strides = [1, 1]} : vector<6x1xf32> to vector<1x1xf32>
    %26 = vector.shape_cast %25 : vector<1x1xf32> to vector<1xf32>
    %27 = vector.shape_cast %26 : vector<1xf32> to vector<1x1xf32>
    %cst_5 = arith.constant dense<0.000000e+00> : vector<2x1xf32>
    %28 = vector.multi_reduction <add>, %24, %cst_5 [2] : vector<2x1x32xf32> to vector<2x1xf32>
    %29 = vector.broadcast %27 : vector<1x1xf32> to vector<2x1xf32>
    %30 = arith.mulf %28, %29 : vector<2x1xf32>
    %31 = tpu.concatenate %11, %21, %30 in 1 : vector<2x3xf32>, vector<2x2xf32>, vector<2x1xf32> -> vector<2x6xf32>
    %c0_6 = arith.constant 0 : index
    %c0_7 = arith.constant 0 : index
    %32 = vector.load %arg3[%c0_6, %c0_7] : memref<2x6xf32, #tpu.memory_space<vmem>>, vector<2x6xf32>
    tpu.vector_store %arg3[%c0_6, %c0_7], %31 {strides = array<i32>} : memref<2x6xf32, #tpu.memory_space<vmem>>, vector<2x6xf32>,
    return
  }
  func.func @transform_0(%arg0: i32) -> (i32, i32, i32) {
    %c0_i32 = arith.constant 0 : i32
    %c0_i32_0 = arith.constant 0 : i32
    %c0_i32_1 = arith.constant 0 : i32
    return %arg0, %c0_i32, %c0_i32_0 : i32, i32, i32
  }
  func.func @transform_1(%arg0: i32) -> (i32, i32) {
    %c0_i32 = arith.constant 0 : i32
    %c0_i32_0 = arith.constant 0 : i32
    %c0_i32_1 = arith.constant 0 : i32
    return %c0_i32, %c0_i32_0 : i32, i32
  }
  func.func @transform_2(%arg0: i32) -> (i32, i32) {
    %c0_i32 = arith.constant 0 : i32
    %c0_i32_0 = arith.constant 0 : i32
    return %arg0, %c0_i32 : i32, i32
  }
}

</mosaic_0001>

<llo_original>
// kernel: tpu_custom_call.1
$region0: #{tpu_custom_call.1}
  #allocation0 [shape = 'u32[]', space=smem, size = 0x4, offset = 0x4, fixed_abs, tag = 'smem constant byte address 0x4 - core index']
  #allocation1 [shape = 'u32[72,128]{1,0:T(1,128)}', space=vmem, size = 0x9000, scoped, tag = 'internal scratch']
  %s0 = inlined_call_operand.vmem [shape: f32[2,4,32], index: 0, kind: input, shape index: {}]
  %s1 = inlined_call_operand.vmem [shape: f32[6,1], index: 1, kind: input, shape index: {}]
  %s2 = inlined_call_operand.hbm [shape: f32[2,6], index: 2, kind: output, shape index: {}]
  %s3 = sld [smem:[#allocation0]]
  $region18: #{tpu_custom_call.1} parent=0
    _
  %s5 = ssub.s32 1, %s3
  %s6 = scalar_select 0, %s5, %s3
  $region1: #{tpu_custom_call.1} parent=0
    #allocation2 [shape = 'u8[1024]{0}', space=vmem, size = 0x400, scoped, tag = 'output window, operand 0, single buffered']
    #allocation3 [shape = 's32[1]{0}', space=sflag, size = 0x4, scoped, tag = 'scoped memory for tpu_custom_call.1']
    %7 = vsyncpa [#allocation3], 0
    // Predicated region
    $region2: #{tpu_custom_call.1} parent=1 // pred_check
      _
    $region3: #{tpu_custom_call.1} parent=1 // pred_check_branch
      %9 = sbr.rel (0) target = $region5
    $region4: #{tpu_custom_call.1} parent=1 // pred_region
      _
    $region5: #{tpu_custom_call.1} parent=1 // pred_fallthru
      _
    // Predicated region
    $region6: #{tpu_custom_call.1} parent=1 // pred_check
      _
    $region7: #{tpu_custom_call.1} parent=1 // pred_check_branch
      %11 = sbr.rel (0) target = $region9
    $region8: #{tpu_custom_call.1} parent=1 // pred_region
      _
    $region9: #{tpu_custom_call.1} parent=1 // pred_fallthru
      _
    %v12 = vld [vmem:[%s0] sm:$0xf]
    %v13 = vld [vmem:[%s0 + $0x4] sm:$0xf]
    %v14 = vld [vmem:[%s1] sm:$0x3f]
    %v15 = vperm.slane %v12, 0
    %v16 = vperm.slane %v13, 0
    %v17 = vmul.f32 %v15, %v12
    %v18 = vmul.f32 %v16, %v13
    %vm19 = vcmask 257025
    %v20 = vsel %vm19, %v17, 0.0
    %21 = vadd.xlane.f32.xlu0 %v20
    %v22 = vpop.xlane.xlu0 %21
    %v23 = vsel %vm19, %v18, 0.0
    %24 = vadd.xlane.f32.xlu0 %v23
    %v25 = vpop.xlane.xlu0 %24
    %v27 = vrot.slane %v14, 7
    %v29 = vmul.f32 %v22, %v27
    %v30 = vmul.f32 %v25, %v27
    %v31 = vperm.slane %v12, 1
    %v32 = vperm.slane %v13, 1
    %v33 = vmul.f32 %v31, %v12
    %v34 = vmul.f32 %v32, %v13
    %vm35 = vcmask 257026
    %v36 = vsel %vm35, %v33, 0.0
    %37 = vadd.xlane.f32.xlu0 %v36
    %v38 = vpop.xlane.xlu0 %37
    %v39 = vsel %vm35, %v34, 0.0
    %40 = vadd.xlane.f32.xlu0 %v39
    %v41 = vpop.xlane.xlu0 %40
    %v42 = vrot.slane %v14, 1
    %v44 = vmul.f32 %v38, %v42
    %v45 = vmul.f32 %v41, %v42
    %v48 = vrot.slane %v12, 1
    %v49 = vrot.slane %v13, 1
    %v52 = vmul.f32 %v12, %v48
    %v53 = vmul.f32 %v13, %v49
    %vm54 = vcmask 256002
    %v55 = vsel %vm54, %v52, 0.0
    %56 = vadd.xlane.f32.xlu0 %v55
    %v57 = vpop.xlane.xlu0 %56
    %v58 = vsel %vm54, %v53, 0.0
    %59 = vadd.xlane.f32.xlu0 %v58
    %v60 = vpop.xlane.xlu0 %59
    %v61 = vperm.slane %v14, 5
    %v63 = vlaneseq
    %v64 = vshrl.u32 %v63, 7
    %v65 = vadd.s32 %v64, 4294967294
    %66 = vset.pattern.permute.xlu0 %v65
    %67 = vperm.xlu0 %66, %v61
    %v68 = vpop.permute.xlu0 %67
    %v70 = vmul.f32 %v57, %v68
    %v71 = vmul.f32 %v60, %v68
    %74 = vset.pattern.permute.xlu0 0
    %75 = vperm.xlu0 %74, %v29
    %v76 = vpop.permute.xlu0 %75
    %77 = vset.pattern.permute.xlu0 0
    %78 = vperm.xlu0 %77, %v30
    %v79 = vpop.permute.xlu0 %78
    %v80 = vlaneseq
    %v81 = vand.u32 %v80, 127
    %v82 = vadd.s32 %v81, 1
    %v83 = vperm.slane %v76, %v82
    %v84 = vperm.slane %v79, %v82
    %vm85 = vcmask 1042434
    %v86 = vsel %vm85, %v84, %v83
    %90 = vset.pattern.permute.xlu0 0
    %91 = vperm.xlu0 %90, %v44
    %v92 = vpop.permute.xlu0 %91
    %93 = vset.pattern.permute.xlu0 0
    %94 = vperm.xlu0 %93, %v45
    %v95 = vpop.permute.xlu0 %94
    %v96 = vadd.s32 %v81, 4294967295
    %v97 = vperm.slane %v92, %v96
    %v98 = vperm.slane %v95, %v96
    %v99 = vsel %vm85, %v98, %v97
    %v103 = vrot.slane %v70, 1
    %v104 = vsel %vm85, %v71, %v103
    %105 = vrot.lane.b32.xlu0 %v104, 5
    %v106 = vpop.permute.xlu0 %105
    %vm108 = vcmask 23552
    %v109 = vsel %vm108, %v86, %v99
    %vm110 = vcmask 39936
    %v111 = vsel %vm110, %v109, %v106
    %vm112 = vcmask 43009
    %113 = vst.msk [vmem:[#allocation2 - $0x1] sm:$0x6] %vm112, %v111
    // Predicated region
    $region10: #{tpu_custom_call.1} parent=1 // pred_check
      _
    $region11: #{tpu_custom_call.1} parent=1 // pred_check_branch
      %115 = sbr.rel (0) target = $region13
    $region12: #{tpu_custom_call.1} parent=1 // pred_region
      %117 = vsyncadd [#allocation3], 0
      %s119 = sshll.u32 [#allocation2], 4
      %s120 = int_to_ptr.vmem [resolvable:$true] %s119
      %s121 = sshll.u32 %s2, 4
      %s122 = int_to_ptr.hbm [resolvable:$true] %s121
      %124 = dma.vmem_to_hbm [thread:$0]  %s120, 32, %s122, [#allocation3]
    $region13: #{tpu_custom_call.1} parent=1 // pred_fallthru
      _
    // Predicated region
    $region14: #{tpu_custom_call.1} parent=1 // pred_check
      _
    $region15: #{tpu_custom_call.1} parent=1 // pred_check_branch
      %126 = sbr.rel (0) target = $region17
    $region16: #{tpu_custom_call.1} parent=1 // pred_region
      %128 = dma.done [#allocation3], 32
    $region17: #{tpu_custom_call.1} parent=1 // pred_fallthru
      _
    %129 = vsyncpa [#allocation3], 1

</llo_original>
